<compile_context>
chip_gen: v7x
topology: tpu7x:2x2x1
jax: 0.10.0
libtpu: 0.0.40
codegen_flags: <defaults>
</compile_context>

<pallas_src>
import functools
import math

import jax
import jax.numpy as jnp
from jax.experimental import pallas as pl
from jax.experimental.pallas import tpu as pltpu


# --------------------------------------------------------------------------- #
# Tiling helpers
# --------------------------------------------------------------------------- #
def _tile(dim, target, align):
    """Largest multiple of `align` dividing `dim`, capped near `target`.

    Falls back to the full dim (always a legal Pallas block) only when `dim`
    itself is not a multiple of `align` (tiny or odd dims such as the test's
    n_hidden=32)."""
    if dim <= align or dim % align != 0:
        return dim
    t = min(dim, max(align, target - target % align))
    while dim % t:
        t -= align
    return t


# --------------------------------------------------------------------------- #
# Tiled linear: x @ W + b   (W stored as (in, out); bf16 MXU, f32 accumulate)
# --------------------------------------------------------------------------- #
def _linear_kernel(x_ref, w_ref, b_ref, o_ref, acc_ref):
    @pl.when(pl.program_id(2) == 0)
    def _():
        acc_ref[...] = jnp.zeros_like(acc_ref)

    # Cast activations to the weight dtype (bf16 fast path) so the MXU runs
    # native bf16 passes; accumulate in f32.
    acc_ref[...] += jnp.dot(x_ref[...].astype(w_ref.dtype), w_ref[...],
                            preferred_element_type=jnp.float32)

    @pl.when(pl.program_id(2) == pl.num_programs(2) - 1)
    def _():
        o_ref[...] = (acc_ref[...] + b_ref[...].astype(jnp.float32)
                      ).astype(o_ref.dtype)


def linear(x, w, b, *, out_dtype=None, tm=256, tn=256, tk=512):
    """x: (M, K), w: (K, N), b: (N,) -> (M, N).

    Tile targets (tm, tn, tk) are tunable per generation (bump toward 512 on
    v6e, keep moderate on v7x)."""
    M, K = x.shape
    N = w.shape[1]
    out_dtype = out_dtype or x.dtype

    # Pad rows to a sublane multiple so we never need a full-M block.
    pad_m = (-M) % 8
    if pad_m:
        x = jnp.pad(x, ((0, pad_m), (0, 0)))
    Mp = M + pad_m

    # TODO(synk): large K/N that are not 128-multiples would need zero-padding
    # of the weight; here such dims fall back to a single full-dim block.
    tm = _tile(Mp, tm, 8)
    tn = _tile(N, tn, 128)
    tk = _tile(K, tk, 128)

    x_it, w_it = x.dtype.itemsize, w.dtype.itemsize
    o_it = jnp.dtype(out_dtype).itemsize
    need = 2 * (tm * tk * x_it + tk * tn * w_it + tn * 4 + tm * tn * o_it) + tm * tn * 4
    vmem_limit = int(max(need + (16 << 20), 32 << 20))

    out = pl.pallas_call(
        _linear_kernel,
        out_shape=jax.ShapeDtypeStruct((Mp, N), out_dtype),
        grid_spec=pltpu.PrefetchScalarGridSpec(
            num_scalar_prefetch=0,
            grid=(Mp // tm, N // tn, K // tk),
            in_specs=[
                pl.BlockSpec((tm, tk), lambda i, j, k: (i, k)),
                pl.BlockSpec((tk, tn), lambda i, j, k: (k, j)),
                pl.BlockSpec((1, tn), lambda i, j, k: (0, j)),
            ],
            out_specs=pl.BlockSpec((tm, tn), lambda i, j, k: (i, j)),
            scratch_shapes=[pltpu.VMEM((tm, tn), jnp.float32)],
        ),
        compiler_params=pltpu.CompilerParams(
            dimension_semantics=("parallel", "parallel", "arbitrary"),
            vmem_limit_bytes=vmem_limit),
    )(x, w, b.reshape(1, N).astype(jnp.float32))
    return out[:M] if pad_m else out


# --------------------------------------------------------------------------- #
# Flash-style multi-head attention over packed projections
#   grid = (B, q_tiles, kv_tiles); m/l/acc resident in VMEM scratch.
# --------------------------------------------------------------------------- #
def _flash_attention_kernel(q_ref, k_ref, v_ref, o_ref, m_scr, l_scr, acc_scr,
                            *, n_head, d_k, q_off, k_off, v_off):
    ki = pl.program_id(2)

    @pl.when(ki == 0)
    def _():
        m_scr[...] = jnp.full_like(m_scr, -jnp.inf)
        l_scr[...] = jnp.zeros_like(l_scr)
        acc_scr[...] = jnp.zeros_like(acc_scr)

    for h in range(n_head):                      # static unroll over heads
        lo, hi = h * d_k, (h + 1) * d_k
        q = q_ref[0, :, q_off + lo:q_off + hi]   # (tq, d_k), pre-scaled by 1/sqrt(d_k)
        k = k_ref[0, :, k_off + lo:k_off + hi]   # (tkv, d_k)
        v = v_ref[0, :, v_off + lo:v_off + hi]   # (tkv, d_k)

        # score = q @ k^T without materializing k.T (contract last dims).
        s = jax.lax.dot_general(q, k, (((1,), (1,)), ((), ())),
                                preferred_element_type=jnp.float32)  # (tq, tkv)

        m_prev = m_scr[h, :, :]                  # (tq, 1)
        l_prev = l_scr[h, :, :]
        m_new = jnp.maximum(m_prev, jnp.max(s, axis=-1, keepdims=True))
        alpha = jnp.exp(m_prev - m_new)
        p = jnp.exp(s - m_new)
        l_scr[h, :, :] = alpha * l_prev + jnp.sum(p, axis=-1, keepdims=True)
        m_scr[h, :, :] = m_new

        pv = jnp.dot(p.astype(v.dtype), v, preferred_element_type=jnp.float32)
        acc_scr[:, lo:hi] = alpha * acc_scr[:, lo:hi] + pv

    @pl.when(ki == pl.num_programs(2) - 1)
    def _():
        for h in range(n_head):
            lo, hi = h * d_k, (h + 1) * d_k
            l = l_scr[h, :, :]
            r = pl.reciprocal(l, approx=True)    # EUP slot (nearly free)
            r = r * (2.0 - l * r)                # one Newton step -> ~f32 exact
            acc_scr[:, lo:hi] = acc_scr[:, lo:hi] * r
        # Single full-width lane-dense store of all heads at once.
        o_ref[0, :, :] = acc_scr[...].astype(o_ref.dtype)


def _col_window(width, col0, n_hidden):
    """(block_width, block_index, in_kernel_offset) for an n_hidden-wide column
    window starting at col0 of an array whose last dim is `width`.  Prefers a
    narrow lane-aligned block; otherwise full width + static in-kernel offset."""
    if n_hidden % 128 == 0 and col0 % n_hidden == 0 and width % n_hidden == 0:
        return n_hidden, col0 // n_hidden, 0
    return width, 0, col0


def flash_attention(q_arr, k_arr, v_arr, *, q_col, k_col, v_col,
                    n_hidden, n_head, out_dtype=None, tq=256, tkv=256):
    """q_arr: (B, Sq, Wq) with projected queries (pre-scaled) in columns
    [q_col, q_col+n_hidden); k_arr/v_arr: (B, Skv, ...) similarly.
    Returns (B, Sq, n_hidden) with heads merged."""
    B, Sq, Wq = q_arr.shape
    _, Skv, Wk = k_arr.shape
    Wv = v_arr.shape[-1]
    d_k = n_hidden // n_head
    out_dtype = out_dtype or q_arr.dtype

    tq = _tile(Sq, tq, 8)
    tkv = _tile(Skv, tkv, 8)
    grid = (B, Sq // tq, Skv // tkv)

    q_bw, q_bi, q_off = _col_window(Wq, q_col, n_hidden)
    k_bw, k_bi, k_off = _col_window(Wk, k_col, n_hidden)
    v_bw, v_bi, v_off = _col_window(Wv, v_col, n_hidden)

    kernel = functools.partial(_flash_attention_kernel, n_head=n_head, d_k=d_k,
                               q_off=q_off, k_off=k_off, v_off=v_off)

    it = q_arr.dtype.itemsize
    need = (2 * (tq * q_bw + tkv * k_bw + tkv * v_bw) * it
            + 2 * tq * n_hidden * jnp.dtype(out_dtype).itemsize
            + tq * n_hidden * 4 + 2 * n_head * tq * 4
            + 4 * tq * tkv * 4)
    vmem_limit = int(max(need + (16 << 20), 32 << 20))

    return pl.pallas_call(
        kernel,
        out_shape=jax.ShapeDtypeStruct((B, Sq, n_hidden), out_dtype),
        grid_spec=pltpu.PrefetchScalarGridSpec(
            num_scalar_prefetch=0,
            grid=grid,
            in_specs=[
                pl.BlockSpec((1, tq, q_bw), lambda b, qi, ki: (b, qi, q_bi)),
                pl.BlockSpec((1, tkv, k_bw), lambda b, qi, ki: (b, ki, k_bi)),
                pl.BlockSpec((1, tkv, v_bw), lambda b, qi, ki: (b, ki, v_bi)),
            ],
            out_specs=pl.BlockSpec((1, tq, n_hidden), lambda b, qi, ki: (b, qi, 0)),
            scratch_shapes=[
                pltpu.VMEM((n_head, tq, 1), jnp.float32),   # running max m
                pltpu.VMEM((n_head, tq, 1), jnp.float32),   # running denom l
                pltpu.VMEM((tq, n_hidden), jnp.float32),    # merged-head context
            ],
        ),
        compiler_params=pltpu.CompilerParams(
            dimension_semantics=("parallel", "parallel", "arbitrary"),
            vmem_limit_bytes=vmem_limit),
    )(q_arr, k_arr, v_arr)


# --------------------------------------------------------------------------- #
# Module wrapper / parameters
# --------------------------------------------------------------------------- #
def init_params(key, n_hidden):
    """Mirror nn.Linear's U(-1/sqrt(in), 1/sqrt(in)) init; weights (in, out)."""
    bound = 1.0 / math.sqrt(n_hidden)
    params = {}
    keys = jax.random.split(key, 8)
    for i, name in enumerate(("query", "key", "value", "out")):
        w = jax.random.uniform(keys[2 * i], (n_hidden, n_hidden),
                               jnp.float32, -bound, bound)
        b = jax.random.uniform(keys[2 * i + 1], (n_hidden,),
                               jnp.float32, -bound, bound)
        params[name] = (w, b)
    return params


def prepare_params(raw, n_head, compute_dtype=jnp.bfloat16):
    """One-time packing: fuse QKV (and KV) weights, fold 1/sqrt(d_k) into the
    query projection, cast weights to the MXU compute dtype (biases stay f32)."""
    (w_q, b_q) = raw["query"]
    (w_k, b_k) = raw["key"]
    (w_v, b_v) = raw["value"]
    (w_o, b_o) = raw["out"]
    n_hidden = w_q.shape[0]
    assert n_hidden % n_head == 0
    scale = 1.0 / math.sqrt(n_hidden // n_head)
    w_qs, b_qs = w_q * scale, b_q * scale
    cd = compute_dtype
    return {
        "n_head": n_head,
        "n_hidden": n_hidden,
        "w_qkv": jnp.concatenate([w_qs, w_k, w_v], axis=1).astype(cd),
        "b_qkv": jnp.concatenate([b_qs, b_k, b_v], axis=0),
        "w_kv": jnp.concatenate([w_k, w_v], axis=1).astype(cd),
        "b_kv": jnp.concatenate([b_k, b_v], axis=0),
        "w_q": w_qs.astype(cd), "b_q": b_qs,
        "w_k": w_k.astype(cd), "b_k": b_k,
        "w_v": w_v.astype(cd), "b_v": b_v,
        "w_o": w_o.astype(cd), "b_o": b_o,
    }


def multi_head_attention(params, query, key, value, mask=None):
    """Forward pass of MultiHeadAttentionLayer (mask=None path).

    Note: the fused-QKV fast path is chosen by Python object identity
    (query is key is value); under jit with separate args it falls back to the
    separate-projection path (correct, just slower)."""
    # TODO(synk): mask path (score.masked_fill(mask == 0, -1e9)) not wired.
    assert mask is None
    n_head = params["n_head"]
    nh = params["n_hidden"]
    B, Sq, _ = query.shape
    out_dtype = query.dtype
    cd = params["w_qkv"].dtype                       # kernel compute dtype

    if key is query and value is query:
        # Self-attention: single fused QKV projection -> packed (B, Sq, 3*nh).
        qkv = linear(query.reshape(B * Sq, nh), params["w_qkv"], params["b_qkv"],
                     out_dtype=cd).reshape(B, Sq, 3 * nh)
        ctx = flash_attention(qkv, qkv, qkv, q_col=0, k_col=nh, v_col=2 * nh,
                              n_hidden=nh, n_head=n_head, out_dtype=cd)
    else:
        Skv = key.shape[1]
        q_act = linear(query.reshape(B * Sq, nh), params["w_q"], params["b_q"],
                       out_dtype=cd).reshape(B, Sq, nh)
        if key is value:
            kv = linear(key.reshape(B * Skv, nh), params["w_kv"], params["b_kv"],
                        out_dtype=cd)
        else:
            # TODO(synk): distinct key/value tensors still need one packing concat.
            k_act = linear(key.reshape(B * Skv, nh), params["w_k"], params["b_k"],
                           out_dtype=cd)
            v_act = linear(value.reshape(B * Skv, nh), params["w_v"], params["b_v"],
                           out_dtype=cd)
            kv = jnp.concatenate([k_act, v_act], axis=-1)
        kv = kv.reshape(B, Skv, 2 * nh)
        ctx = flash_attention(q_act, kv, kv, q_col=0, k_col=0, v_col=nh,
                              n_hidden=nh, n_head=n_head, out_dtype=cd)

    out = linear(ctx.reshape(B * Sq, nh), params["w_o"], params["b_o"],
                 out_dtype=out_dtype)
    return out.reshape(B, Sq, nh)


# --------------------------------------------------------------------------- #
# Pure-JAX fp32 reference (mirrors the PyTorch module)
# --------------------------------------------------------------------------- #
def reference(raw, query, key, value, n_head):
    B, Sq, nh = query.shape
    d_k = nh // n_head

    def proj(x, name):
        w, b = raw[name]
        S = x.shape[1]
        out = x.reshape(B * S, nh) @ w + b
        return out.reshape(B, S, n_head, d_k).transpose(0, 2, 1, 3)

    q = proj(query, "query")
    k = proj(key, "key")
    v = proj(value, "value")
    score = jnp.einsum("bhqd,bhkd->bhqk", q, k) / math.sqrt(d_k)
    p = jax.nn.softmax(score, axis=-1)
    ctx = jnp.einsum("bhqk,bhkd->bhqd", p, v)
    ctx = ctx.transpose(0, 2, 1, 3).reshape(B * Sq, nh)
    w_o, b_o = raw["out"]
    return (ctx @ w_o + b_o).reshape(B, Sq, nh)


if __name__ == "__main__":
    B, S, n_hidden, n_head = 2, 8, 32, 4

    root = jax.random.PRNGKey(0)
    k_p, k_q, k_k, k_v = jax.random.split(root, 4)
    raw = init_params(k_p, n_hidden)

    x_q = jax.random.normal(k_q, (B, S, n_hidden), jnp.float32)
    x_k = jax.random.normal(k_k, (B, S, n_hidden), jnp.float32)
    x_v = jax.random.normal(k_v, (B, S, n_hidden), jnp.float32)

    cases = [
        ("self", x_q, x_q, x_q),              # fused-QKV fast path
        ("cross-shared-kv", x_q, x_k, x_k),   # fused-KV path
        ("cross-distinct", x_q, x_k, x_v),    # separate projections
    ]

    # f32 weights: tight check of the kernel math.  bf16 weights: the
    # production fast path, compared loosely (bf16 rounding of x, W, and the
    # packed qkv / ctx intermediates).
    for dtype, tol in ((jnp.float32, 2e-3), (jnp.bfloat16, 1e-1)):
        params = prepare_params(raw, n_head, compute_dtype=dtype)
        for name, q_in, k_in, v_in in cases:
            out = jax.block_until_ready(multi_head_attention(params, q_in, k_in, v_in))
            ref = reference(raw, q_in, k_in, v_in, n_head)
            assert out.shape == ref.shape
            assert jnp.allclose(out, ref, atol=tol, rtol=tol), (
                f"{name} ({dtype.__name__}) mismatch, "
                f"max abs err {jnp.max(jnp.abs(out - ref))}")

    print("KERNEL_OK")
</pallas_src>

<mosaic_0001>
module attributes {stable_mosaic.version = 11 : i64} {
  func.func @_linear_kernel(%arg0: i32, %arg1: i32, %arg2: i32, %arg3: memref<16x32xf32, #tpu.memory_space<vmem>>, %arg4: memref<32x96xf32, #tpu.memory_space<vmem>>, %arg5: memref<1x96xf32, #tpu.memory_space<vmem>>, %arg6: memref<16x96xf32, #tpu.memory_space<vmem>>, %arg7: memref<16x96xf32, #tpu.memory_space<vmem>>) attributes {dimension_semantics = [#tpu.dimension_semantics<parallel>, #tpu.dimension_semantics<parallel>, #tpu.dimension_semantics<arbitrary>], iteration_bounds = array<i64: 1, 1, 1>, scalar_prefetch = 0 : i64, scratch_operands = 1 : i64, tpu.core_type = #tpu.core_type<tc>, window_params = [{transform_indices = @transform_0, window_bounds = array<i64: 16, 32>}, {transform_indices = @transform_1, window_bounds = array<i64: 32, 96>}, {transform_indices = @transform_2, window_bounds = array<i64: 1, 96>}, {transform_indices = @transform_3, window_bounds = array<i64: 16, 96>}]} {
    %c0_i32 = arith.constant 0 : i32
    %0 = arith.cmpi eq, %arg2, %c0_i32 : i32
    %1 = arith.extui %0 : i1 to i32
    %c0_i32_0 = arith.constant 0 : i32
    %2 = arith.cmpi ne, %1, %c0_i32_0 : i32
    scf.if %2 {
      %cst_10 = arith.constant 0.000000e+00 : f32
      %12 = vector.broadcast %cst_10 : f32 to vector<16x96xf32>
      %c0_11 = arith.constant 0 : index
      %c0_12 = arith.constant 0 : index
      %13 = vector.load %arg7[%c0_11, %c0_12] : memref<16x96xf32, #tpu.memory_space<vmem>>, vector<16x96xf32>
      tpu.vector_store %arg7[%c0_11, %c0_12], %12 {strides = array<i32>} : memref<16x96xf32, #tpu.memory_space<vmem>>, vector<16x96xf32>,
    } else {
    }
    %c0 = arith.constant 0 : index
    %c0_1 = arith.constant 0 : index
    %3 = vector.load %arg7[%c0, %c0_1] : memref<16x96xf32, #tpu.memory_space<vmem>>, vector<16x96xf32>
    %c0_2 = arith.constant 0 : index
    %c0_3 = arith.constant 0 : index
    %4 = vector.load %arg3[%c0_2, %c0_3] : memref<16x32xf32, #tpu.memory_space<vmem>>, vector<16x32xf32>
    %c0_4 = arith.constant 0 : index
    %c0_5 = arith.constant 0 : index
    %5 = vector.load %arg4[%c0_4, %c0_5] : memref<32x96xf32, #tpu.memory_space<vmem>>, vector<32x96xf32>
    %cst = arith.constant dense<0.000000e+00> : vector<16x96xf32>
    %6 = tpu.matmul %4, %5, %cst {dimension_numbers = #tpu.dot_dimension_numbers<[1], [0], [0], [1], [0, 0, 1, 1], [], []>} : vector<16x32xf32>, vector<32x96xf32>, vector<16x96xf32> -> vector<16x96xf32>
    %7 = arith.addf %3, %6 : vector<16x96xf32>
    %c0_6 = arith.constant 0 : index
    %c0_7 = arith.constant 0 : index
    %8 = vector.load %arg7[%c0_6, %c0_7] : memref<16x96xf32, #tpu.memory_space<vmem>>, vector<16x96xf32>
    tpu.vector_store %arg7[%c0_6, %c0_7], %7 {strides = array<i32>} : memref<16x96xf32, #tpu.memory_space<vmem>>, vector<16x96xf32>,
    %c0_i32_8 = arith.constant 0 : i32
    %9 = arith.cmpi eq, %arg2, %c0_i32_8 : i32
    %10 = arith.extui %9 : i1 to i32
    %c0_i32_9 = arith.constant 0 : i32
    %11 = arith.cmpi ne, %10, %c0_i32_9 : i32
    scf.if %11 {
      %c0_10 = arith.constant 0 : index
      %c0_11 = arith.constant 0 : index
      %12 = vector.load %arg7[%c0_10, %c0_11] : memref<16x96xf32, #tpu.memory_space<vmem>>, vector<16x96xf32>
      %c0_12 = arith.constant 0 : index
      %c0_13 = arith.constant 0 : index
      %13 = vector.load %arg5[%c0_12, %c0_13] : memref<1x96xf32, #tpu.memory_space<vmem>>, vector<1x96xf32>
      %14 = vector.broadcast %13 : vector<1x96xf32> to vector<16x96xf32>
      %15 = arith.addf %12, %14 : vector<16x96xf32>
      %c0_14 = arith.constant 0 : index
      %c0_15 = arith.constant 0 : index
      %16 = vector.load %arg6[%c0_14, %c0_15] : memref<16x96xf32, #tpu.memory_space<vmem>>, vector<16x96xf32>
      tpu.vector_store %arg6[%c0_14, %c0_15], %15 {strides = array<i32>} : memref<16x96xf32, #tpu.memory_space<vmem>>, vector<16x96xf32>,
    } else {
    }
    return
  }
  func.func @transform_0(%arg0: i32, %arg1: i32, %arg2: i32) -> (i32, i32) {
    %c0_i32 = arith.constant 0 : i32
    return %arg0, %arg2 : i32, i32
  }
  func.func @transform_1(%arg0: i32, %arg1: i32, %arg2: i32) -> (i32, i32) {
    %c0_i32 = arith.constant 0 : i32
    return %arg2, %arg1 : i32, i32
  }
  func.func @transform_2(%arg0: i32, %arg1: i32, %arg2: i32) -> (i32, i32) {
    %c0_i32 = arith.constant 0 : i32
    %c0_i32_0 = arith.constant 0 : i32
    return %c0_i32, %arg1 : i32, i32
  }
  func.func @transform_3(%arg0: i32, %arg1: i32, %arg2: i32) -> (i32, i32) {
    %c0_i32 = arith.constant 0 : i32
    return %arg0, %arg1 : i32, i32
  }
}

</mosaic_0001>

<llo_original>
// kernel: tpu_custom_call.1
$region0: #{tpu_custom_call.1}
  #allocation0 [shape = 'u32[]', space=smem, size = 0x4, offset = 0x4, fixed_abs, tag = 'smem constant byte address 0x4 - core index']
  #allocation1 [shape = 'u32[144,128]{1,0:T(1,128)}', space=vmem, size = 0x12000, scoped, tag = 'internal scratch']
  #allocation2 [shape = 'f32[16,96]{1,0:T(8,128)}', space=vmem, size = 0x2000, scoped, tag = 'scratch operand']
  %s0 = inlined_call_operand.hbm [shape: f32[16,32], index: 0, kind: input, shape index: {}]
  %s1 = inlined_call_operand.hbm [shape: f32[32,96], index: 1, kind: input, shape index: {}]
  %s2 = inlined_call_operand.vmem [shape: f32[1,96], index: 2, kind: input, shape index: {}]
  %s3 = inlined_call_operand.hbm [shape: f32[16,96], index: 3, kind: output, shape index: {}]
  %s4 = sld [smem:[#allocation0]]
  $region38: #{tpu_custom_call.1} parent=0
    _
  %s6 = ssub.s32 1, %s4
  %s7 = scalar_select 0, %s6, %s4
  $region1: #{tpu_custom_call.1} parent=0
    #allocation3 [shape = 'u8[8192]{0}', space=vmem, size = 0x2000, scoped, tag = 'input window, operand 0, single buffered']
    #allocation4 [shape = 's32[1]{0}', space=sflag, size = 0x4, scoped, tag = 'scoped memory for tpu_custom_call.1']
    #allocation5 [shape = 's32[1]{0}', space=sflag, size = 0x4, scoped, tag = 'scoped memory for tpu_custom_call.1']
    #allocation6 [shape = 'u8[16384]{0}', space=vmem, size = 0x4000, scoped, tag = 'input window, operand 1, single buffered']
    #allocation7 [shape = 's32[1]{0}', space=sflag, size = 0x4, scoped, tag = 'scoped memory for tpu_custom_call.1']
    #allocation8 [shape = 'u8[8192]{0}', space=vmem, size = 0x2000, scoped, tag = 'output window, operand 0, single buffered']
    %8 = vsyncpa [#allocation4], 0
    %9 = vsyncpa [#allocation7], 0
    %10 = vsyncpa [#allocation5], 0
    // Predicated region
    $region2: #{tpu_custom_call.1} parent=1 // pred_check
      _
    $region3: #{tpu_custom_call.1} parent=1 // pred_check_branch
      %12 = sbr.rel (0) target = $region5
    $region4: #{tpu_custom_call.1} parent=1 // pred_region
      %s14 = ssub.s32 256, 256
      %15 = vsyncadd [#allocation4], %s14
      %s16 = sshll.u32 [#allocation3], 4
      %s17 = int_to_ptr.vmem [resolvable:$true] %s16
      %22 = dma.hbm_to_vmem [thread:$0]  %s0, 256, %s17, [#allocation4], 128, 128, 8
    $region5: #{tpu_custom_call.1} parent=1 // pred_fallthru
      _
    // Predicated region
    $region6: #{tpu_custom_call.1} parent=1 // pred_check
      _
    $region7: #{tpu_custom_call.1} parent=1 // pred_check_branch
      %24 = sbr.rel (0) target = $region9
    $region8: #{tpu_custom_call.1} parent=1 // pred_region
      %s26 = ssub.s32 512, 512
      %27 = vsyncadd [#allocation7], %s26
      %s28 = sshll.u32 [#allocation6], 4
      %s29 = int_to_ptr.vmem [resolvable:$true] %s28
      %34 = dma.hbm_to_vmem [thread:$0]  %s1, 512, %s29, [#allocation7], 128, 128, 8
    $region9: #{tpu_custom_call.1} parent=1 // pred_fallthru
      _
    // Predicated region
    $region10: #{tpu_custom_call.1} parent=1 // pred_check
      _
    $region11: #{tpu_custom_call.1} parent=1 // pred_check_branch
      %36 = sbr.rel (0) target = $region13
    $region12: #{tpu_custom_call.1} parent=1 // pred_region
      _
    $region13: #{tpu_custom_call.1} parent=1 // pred_fallthru
      _
    // Predicated region
    $region14: #{tpu_custom_call.1} parent=1 // pred_check
      _
    $region15: #{tpu_custom_call.1} parent=1 // pred_check_branch
      %38 = sbr.rel (0) target = $region17
    $region16: #{tpu_custom_call.1} parent=1 // pred_region
      %39 = dma.done [#allocation4], 256
    $region17: #{tpu_custom_call.1} parent=1 // pred_fallthru
      _
    // Predicated region
    $region18: #{tpu_custom_call.1} parent=1 // pred_check
      _
    $region19: #{tpu_custom_call.1} parent=1 // pred_check_branch
      %41 = sbr.rel (0) target = $region21
    $region20: #{tpu_custom_call.1} parent=1 // pred_region
      %42 = dma.done [#allocation7], 512
    $region21: #{tpu_custom_call.1} parent=1 // pred_fallthru
      _
    %p43 = scmp.eq.s32.totalorder 0, 0
    // Predicated region
    $region22: #{tpu_custom_call.1} parent=1 // pred_check
      %p44 = pneg %p43
    $region23: #{tpu_custom_call.1} parent=1 // pred_check_branch
      %46 = sbr.rel (%p44) target = $region25
    $region24: #{tpu_custom_call.1} parent=1 // pred_region
      %vm47 = vcmask 785408
      %48 = vst.msk [vmem:[#allocation2] sm:$0xff] %vm47, 0.0
      %49 = vst.msk [vmem:[#allocation2 + $0x8] sm:$0xff] %vm47, 0.0
    $region25: #{tpu_custom_call.1} parent=1 // pred_fallthru
      _
    %v50 = vld [vmem:[#allocation2] sm:$0xff]
    %v51 = vld [vmem:[#allocation2 + $0x8] sm:$0xff]
    %v52 = vld [vmem:[#allocation3] sm:$0xff]
    %v53 = vld [vmem:[#allocation3 + $0x8] sm:$0xff]
    %v54 = vld [vmem:[#allocation6] sm:$0xff]
    %v55 = vld [vmem:[#allocation6 + $0x8] sm:$0xff]
    %v56 = vld [vmem:[#allocation6 + $0x10] sm:$0xff]
    %v57 = vld [vmem:[#allocation6 + $0x18] sm:$0xff]
    %vm58 = vcmask 261120
    %v60 = vsel %vm58, %v52, 0
    %v63 = vsel %vm58, %v53, 0
    %65 = vmatprep.subr.mxu0 0.0
    %66 = vmatpush1.msra.mxu0 %v54
    %67 = vmatprep.subr.mxu0 0.0
    %68 = vmatpush1.msra.mxu0 %v55
    %69 = vmatprep.subr.mxu0 0.0
    %70 = vmatpush1.msra.mxu0 %v56
    %71 = vmatprep.subr.mxu0 0.0
    %72 = vmatpush1.msra.mxu0 %v57
    %73 = vmatprep.subr.mxu0 0.0
    %74 = vmatpush1.msra.mxu0 0.0
    %75 = vmatprep.subr.mxu0 0.0
    %76 = vmatpush1.msra.mxu0 0.0
    %77 = vmatprep.subr.mxu0 0.0
    %78 = vmatpush1.msra.mxu0 0.0
    %79 = vmatprep.subr.mxu0 0.0
    %80 = vmatpush1.msra.mxu0 0.0
    %81 = vmatprep.subr.mxu0 0.0
    %82 = vmatpush1.msra.mxu0 0.0
    %83 = vmatprep.subr.mxu0 0.0
    %84 = vmatpush1.msra.mxu0 0.0
    %85 = vmatprep.subr.mxu0 0.0
    %86 = vmatpush1.msra.mxu0 0.0
    %87 = vmatprep.subr.mxu0 0.0
    %88 = vmatpush1.msra.mxu0 0.0
    %89 = vmatprep.subr.mxu0 0.0
    %90 = vmatpush1.msra.mxu0 0.0
    %91 = vmatprep.subr.mxu0 0.0
    %92 = vmatpush1.msra.mxu0 0.0
    %93 = vmatprep.subr.mxu0 0.0
    %94 = vmatpush1.msra.mxu0 0.0
    %95 = vmatprep.subr.mxu0 0.0
    %96 = vmatpush1.msra.mxu0 0.0
    %97 = vmatprep.subr.mxu0 0.0
    %98 = vmatpush1.msra.mxu0 0.0
    %99 = vmatprep.subr.mxu0 0.0
    %100 = vmatpush1.msra.mxu0 0.0
    %101 = vmatprep.subr.mxu0 0.0
    %102 = vmatpush1.msra.mxu0 0.0
    %103 = vmatprep.subr.mxu0 0.0
    %104 = vmatpush1.msra.mxu0 0.0
    %105 = vmatprep.subr.mxu0 0.0
    %106 = vmatpush1.msra.mxu0 0.0
    %107 = vmatprep.subr.mxu0 0.0
    %108 = vmatpush1.msra.mxu0 0.0
    %109 = vmatprep.subr.mxu0 0.0
    %110 = vmatpush1.msra.mxu0 0.0
    %111 = vmatprep.subr.mxu0 0.0
    %112 = vmatpush1.msra.mxu0 0.0
    %113 = vmatprep.subr.mxu0 0.0
    %114 = vmatpush1.msra.mxu0 0.0
    %115 = vmatprep.subr.mxu0 0.0
    %116 = vmatpush1.msra.mxu0 0.0
    %117 = vmatprep.subr.mxu0 0.0
    %118 = vmatpush1.msra.mxu0 0.0
    %119 = vmatprep.subr.mxu0 0.0
    %120 = vmatpush1.msra.mxu0 0.0
    %121 = vmatprep.subr.mxu0 0.0
    %122 = vmatpush1.msra.mxu0 0.0
    %123 = vmatprep.subr.mxu0 0.0
    %124 = vmatpush1.msra.mxu0 0.0
    %125 = vmatprep.subr.mxu0 0.0
    %126 = vmatpush1.msra.mxu0 0.0
    %127 = vmatprep.subr.mxu0 0.0
    %128 = vmatpush1.msra.mxu0 0.0
    %129 = vmatprep.mubr.f32.mxu0 0.0
    %130 = vmatmul.mubr.f32.gmra.mrb[0].mxu0 %v60
    %v131 = vpop.f32.mrb[0].mxu0
    %v132 = vadd.f32 0.0, %v131
    %v133 = vpop.f32.mrb[0].mxu0
    %134 = vmatprep.mubr.f32.mxu0 0.0
    %135 = vmatmul.mubr.f32.gmra.mrb[0].mxu0 %v63
    %v136 = vpop.f32.mrb[0].mxu0
    %v137 = vadd.f32 0.0, %v136
    %v138 = vpop.f32.mrb[0].mxu0
    %139 = vdwg.mxu0
    %v140 = vadd.f32 %v50, %v132
    %v141 = vadd.f32 %v51, %v137
    %vm142 = vcmask 785408
    %143 = vst.msk [vmem:[#allocation2] sm:$0xff] %vm142, %v140
    %144 = vst.msk [vmem:[#allocation2 + $0x8] sm:$0xff] %vm142, %v141
    // Predicated region
    $region26: #{tpu_custom_call.1} parent=1 // pred_check
      %p145 = pneg %p43
    $region27: #{tpu_custom_call.1} parent=1 // pred_check_branch
      %147 = sbr.rel (%p145) target = $region29
    $region28: #{tpu_custom_call.1} parent=1 // pred_region
      %v148 = vld [vmem:[#allocation2] sm:$0xff]
      %v149 = vld [vmem:[#allocation2 + $0x8] sm:$0xff]
      %v150 = vld [vmem:[%s2] sm:$0x1]
      %v152 = vlaneseq
      %v153 = vshrl.u32 %v152, 7
      %v154 = vsub.s32 0, %v153
      %v155 = vrot.slane %v150, %v154
      %v157 = vadd.f32 %v148, %v155
      %v158 = vadd.f32 %v149, %v155
      %159 = vst.msk [vmem:[#allocation8] sm:$0xff] %vm142, %v157
      %160 = vst.msk [vmem:[#allocation8 + $0x8] sm:$0xff] %vm142, %v158
    $region29: #{tpu_custom_call.1} parent=1 // pred_fallthru
      _
    // Predicated region
    $region30: #{tpu_custom_call.1} parent=1 // pred_check
      _
    $region31: #{tpu_custom_call.1} parent=1 // pred_check_branch
      %162 = sbr.rel (0) target = $region33
    $region32: #{tpu_custom_call.1} parent=1 // pred_region
      %s164 = ssub.s32 256, 256
      %165 = vsyncadd [#allocation5], %s164
      %s166 = sshll.u32 [#allocation8], 4
      %s167 = int_to_ptr.vmem [resolvable:$true] %s166
      %172 = dma.vmem_to_hbm [thread:$0]  %s167, 256, %s3, [#allocation5], 128, 128, 8
    $region33: #{tpu_custom_call.1} parent=1 // pred_fallthru
      _
    // Predicated region
    $region34: #{tpu_custom_call.1} parent=1 // pred_check
      _
    $region35: #{tpu_custom_call.1} parent=1 // pred_check_branch
      %174 = sbr.rel (0) target = $region37
    $region36: #{tpu_custom_call.1} parent=1 // pred_region
      %175 = dma.done [#allocation5], 256
    $region37: #{tpu_custom_call.1} parent=1 // pred_fallthru
      _
    %176 = vsyncpa [#allocation4], 1
    %177 = vsyncpa [#allocation7], 1
    %178 = vsyncpa [#allocation5], 1

</llo_original>
